<compile_context>
chip_gen: v5e
topology: v5e:2x2
jax: 0.10.0
libtpu: 0.0.40
codegen_flags: <defaults>
</compile_context>

<pallas_src>
import functools

import jax
import jax.numpy as jnp
from jax.experimental import pallas as pl
from jax.experimental.pallas import tpu as pltpu

_F32_MAX = float(jnp.finfo(jnp.float32).max)


def _round_up(a, b):
    return (a + b - 1) // b * b


def _bird_loss_kernel(x_ref, y_ref, out_ref, *, pos_weight, rows, cols,
                      tb, tc, mask_rows, mask_cols):
    # Load in native dtype, compute in f32.
    x = x_ref[...].astype(jnp.float32)
    y = y_ref[...].astype(jnp.float32)

    # Sanitize: NaN / +-Inf logits -> 0.  |x| <= F32_MAX is false for NaN and
    # +/-Inf, so this is a single fused check (no isnan + isinf + or).
    x = jnp.where(jnp.abs(x) <= _F32_MAX, x, 0.0)

    # Numerically stable BCEWithLogitsLoss (PyTorch formulation):
    #   log_weight = 1 + (pos_weight - 1) * y
    #   loss = (1 - y) * x + log_weight * (max(-x, 0) + log1p(exp(-|x|)))
    softplus_neg_x = jnp.maximum(-x, 0.0) + jnp.log1p(jnp.exp(-jnp.abs(x)))
    if pos_weight == 1.0:
        loss = (1.0 - y) * x + softplus_neg_x
    else:
        log_weight = 1.0 + (pos_weight - 1.0) * y
        loss = (1.0 - y) * x + log_weight * softplus_neg_x

    # Zero out contributions from padded rows / columns (ragged edges read
    # unspecified values from the overhanging block; mask them away).
    if mask_rows or mask_cols:
        valid = None
        if mask_rows:
            row_ids = (pl.program_id(0) * tb
                       + jax.lax.broadcasted_iota(jnp.int32, (tb, tc), 0))
            valid = row_ids < rows
        if mask_cols:
            col_ok = jax.lax.broadcasted_iota(jnp.int32, (tb, tc), 1) < cols
            valid = col_ok if valid is None else jnp.logical_and(valid, col_ok)
        loss = jnp.where(valid, loss, 0.0)

    # Lane-dense per-block partial sums: only a sublane reduction in-kernel;
    # the cross-lane / cross-block reduction happens on the tiny output outside.
    out_ref[...] = jnp.sum(loss, axis=0, keepdims=True)


def bird_loss(x, y, *, pos_weight=1.0, reduction="mean",
              max_block_bytes=4 * 1024 * 1024):
    """Pallas equivalent of BirdLoss(reduction=..., pos_weight=...)."""
    assert x.shape == y.shape and x.ndim == 2
    B, C = x.shape
    C_pad = _round_up(C, 128)

    # Row-block size: multiple of 8, full class axis per block, sized so the
    # double-buffered (x, y) working set stays around <= 2 * max_block_bytes
    # (default ~8 MiB, safe on every TPU generation's scoped-VMEM default).
    bytes_per_row = C_pad * (x.dtype.itemsize + y.dtype.itemsize)
    tb = max(8, (max_block_bytes // max(bytes_per_row, 1)) // 8 * 8)
    tb = min(tb, _round_up(B, 8))
    num_blocks = pl.cdiv(B, tb)

    kernel = functools.partial(
        _bird_loss_kernel,
        pos_weight=float(pos_weight), rows=B, cols=C, tb=tb, tc=C_pad,
        mask_rows=(B % tb != 0), mask_cols=(C_pad != C))

    n = B * C
    compiler_kwargs = dict(dimension_semantics=("parallel",))
    working_set = (2 * tb * C_pad * (x.dtype.itemsize + y.dtype.itemsize)
                   + 2 * C_pad * 4)
    if working_set > 12 * 1024 * 1024:
        # Only for degenerate huge-C cases (tb already clamped to 8).
        compiler_kwargs["vmem_limit_bytes"] = int(working_set * 1.5)

    partials = pl.pallas_call(
        kernel,
        out_shape=jax.ShapeDtypeStruct((num_blocks, C_pad), jnp.float32),
        grid_spec=pltpu.PrefetchScalarGridSpec(
            num_scalar_prefetch=0,
            grid=(num_blocks,),
            in_specs=[
                pl.BlockSpec((tb, C_pad), lambda i: (i, 0)),
                pl.BlockSpec((tb, C_pad), lambda i: (i, 0)),
            ],
            out_specs=pl.BlockSpec((1, C_pad), lambda i: (i, 0)),
        ),
        compiler_params=pltpu.CompilerParams(**compiler_kwargs),
        cost_estimate=pl.CostEstimate(
            flops=10 * n,
            transcendentals=2 * n,
            bytes_accessed=(x.size * x.dtype.itemsize
                            + y.size * y.dtype.itemsize
                            + num_blocks * C_pad * 4)),
    )(x, y)

    total = jnp.sum(partials)
    if reduction == "mean":
        return total * (1.0 / float(n))
    elif reduction == "sum":
        return total
    else:
        # TODO(synk): reduction='none' (per-element loss output) not implemented.
        raise NotImplementedError(reduction)


def _reference(x, y, pos_weight=1.0):
    x = x.astype(jnp.float32)
    x = jnp.where(jnp.isnan(x), 0.0, x)
    x = jnp.where(jnp.isinf(x), 0.0, x)
    y = y.astype(jnp.float32)
    log_w = 1.0 + (pos_weight - 1.0) * y
    sp = jnp.maximum(-x, 0.0) + jnp.log1p(jnp.exp(-jnp.abs(x)))
    return jnp.mean((1.0 - y) * x + log_w * sp)


if __name__ == "__main__":
    key = jax.random.PRNGKey(0)
    kx, ky = jax.random.split(key)

    # Small (batch, num_classes) logits; C deliberately not a multiple of 128
    # and B not a multiple of the row block to exercise the masking path.
    B, C = 20, 264
    x = jax.random.normal(kx, (B, C), dtype=jnp.float32) * 3.0
    y = (jax.random.uniform(ky, (B, C)) > 0.5).astype(jnp.float32)

    # Inject NaN / Inf values to exercise the sanitization path.
    x = x.at[0, 0].set(jnp.nan)
    x = x.at[1, 5].set(jnp.inf)
    x = x.at[2, 7].set(-jnp.inf)

    # f32 logits, pos_weight = 1 (specialized fast path).
    out = jax.block_until_ready(bird_loss(x, y, pos_weight=1.0))
    ref = _reference(x, y, pos_weight=1.0)
    assert jnp.isfinite(out), out
    assert jnp.allclose(out, ref, rtol=1e-5, atol=1e-5), (out, ref)

    # f32 logits, pos_weight = 3 (log_weight path).
    out_pw = jax.block_until_ready(bird_loss(x, y, pos_weight=3.0))
    ref_pw = _reference(x, y, pos_weight=3.0)
    assert jnp.allclose(out_pw, ref_pw, rtol=1e-5, atol=1e-5), (out_pw, ref_pw)

    # bf16 logits (half the HBM traffic); kernel casts to f32 internally.
    x_bf16 = x.astype(jnp.bfloat16)
    out_bf = jax.block_until_ready(bird_loss(x_bf16, y, pos_weight=1.0))
    ref_bf = _reference(x_bf16, y, pos_weight=1.0)
    assert jnp.allclose(out_bf, ref_bf, rtol=1e-5, atol=1e-5), (out_bf, ref_bf)

    print("KERNEL_OK")
</pallas_src>

<mosaic_0001>
module attributes {stable_mosaic.version = 11 : i64} {
  func.func @_bird_loss_kernel(%arg0: i32, %arg1: memref<24x384xf32, #tpu.memory_space<vmem>>, %arg2: memref<24x384xf32, #tpu.memory_space<vmem>>, %arg3: memref<1x384xf32, #tpu.memory_space<vmem>>) attributes {dimension_semantics = [#tpu.dimension_semantics<parallel>], iteration_bounds = array<i64: 1>, scalar_prefetch = 0 : i64, scratch_operands = 0 : i64, tpu.core_type = #tpu.core_type<tc>, window_params = [{transform_indices = @transform_0, window_bounds = array<i64: 24, 384>}, {transform_indices = @transform_1, window_bounds = array<i64: 24, 384>}, {transform_indices = @transform_2, window_bounds = array<i64: 1, 384>}]} {
    %c0 = arith.constant 0 : index
    %c0_0 = arith.constant 0 : index
    %0 = vector.load %arg1[%c0, %c0_0] : memref<24x384xf32, #tpu.memory_space<vmem>>, vector<24x384xf32>
    %c0_1 = arith.constant 0 : index
    %c0_2 = arith.constant 0 : index
    %1 = vector.load %arg2[%c0_1, %c0_2] : memref<24x384xf32, #tpu.memory_space<vmem>>, vector<24x384xf32>
    %2 = math.absf %0 : vector<24x384xf32>
    %cst = arith.constant 3.40282347E+38 : f32
    %3 = vector.broadcast %cst : f32 to vector<24x384xf32>
    %4 = arith.cmpf ole, %2, %3 : vector<24x384xf32>
    %cst_3 = arith.constant 0.000000e+00 : f32
    %5 = vector.broadcast %cst_3 : f32 to vector<24x384xf32>
    %6 = arith.select %4, %0, %5 : vector<24x384xi1>, vector<24x384xf32>
    %cst_4 = arith.constant 0.000000e+00 : f32
    %7 = vector.broadcast %cst_4 : f32 to vector<24x384xf32>
    %8 = arith.subf %7, %6 : vector<24x384xf32>
    %cst_5 = arith.constant 0.000000e+00 : f32
    %9 = vector.broadcast %cst_5 : f32 to vector<24x384xf32>
    %10 = arith.maximumf %8, %9 : vector<24x384xf32>
    %11 = math.absf %6 : vector<24x384xf32>
    %cst_6 = arith.constant 0.000000e+00 : f32
    %12 = vector.broadcast %cst_6 : f32 to vector<24x384xf32>
    %13 = arith.subf %12, %11 : vector<24x384xf32>
    %14 = math.exp %13 : vector<24x384xf32>
    %15 = math.log1p %14 : vector<24x384xf32>
    %16 = arith.addf %10, %15 : vector<24x384xf32>
    %cst_7 = arith.constant 1.000000e+00 : f32
    %17 = vector.broadcast %cst_7 : f32 to vector<24x384xf32>
    %18 = arith.subf %17, %1 : vector<24x384xf32>
    %19 = arith.mulf %18, %6 : vector<24x384xf32>
    %20 = arith.addf %19, %16 : vector<24x384xf32>
    %c24_i32 = arith.constant 24 : i32
    %21 = arith.muli %arg0, %c24_i32 : i32
    %22 = tpu.iota {dimensions = array<i32: 0>} : vector<24x384xi32>
    %23 = vector.broadcast %21 : i32 to vector<24x384xi32>
    %24 = arith.addi %23, %22 : vector<24x384xi32>
    %c20_i32 = arith.constant 20 : i32
    %25 = vector.broadcast %c20_i32 : i32 to vector<24x384xi32>
    %26 = arith.cmpi slt, %24, %25 : vector<24x384xi32>
    %27 = tpu.iota {dimensions = array<i32: 1>} : vector<24x384xi32>
    %c264_i32 = arith.constant 264 : i32
    %28 = vector.broadcast %c264_i32 : i32 to vector<24x384xi32>
    %29 = arith.cmpi slt, %27, %28 : vector<24x384xi32>
    %30 = arith.andi %26, %29 : vector<24x384xi1>
    %cst_8 = arith.constant 0.000000e+00 : f32
    %31 = vector.broadcast %cst_8 : f32 to vector<24x384xf32>
    %32 = arith.select %30, %20, %31 : vector<24x384xi1>, vector<24x384xf32>
    %cst_9 = arith.constant dense<0.000000e+00> : vector<384xf32>
    %33 = vector.multi_reduction <add>, %32, %cst_9 [0] : vector<24x384xf32> to vector<384xf32>
    %34 = vector.shape_cast %33 : vector<384xf32> to vector<1x384xf32>
    %c0_10 = arith.constant 0 : index
    %c0_11 = arith.constant 0 : index
    %35 = vector.load %arg3[%c0_10, %c0_11] : memref<1x384xf32, #tpu.memory_space<vmem>>, vector<1x384xf32>
    tpu.vector_store %arg3[%c0_10, %c0_11], %34 {strides = array<i32>} : memref<1x384xf32, #tpu.memory_space<vmem>>, vector<1x384xf32>,
    return
  }
  func.func @transform_0(%arg0: i32) -> (i32, i32) {
    %c0_i32 = arith.constant 0 : i32
    %c0_i32_0 = arith.constant 0 : i32
    return %arg0, %c0_i32 : i32, i32
  }
  func.func @transform_1(%arg0: i32) -> (i32, i32) {
    %c0_i32 = arith.constant 0 : i32
    %c0_i32_0 = arith.constant 0 : i32
    return %arg0, %c0_i32 : i32, i32
  }
  func.func @transform_2(%arg0: i32) -> (i32, i32) {
    %c0_i32 = arith.constant 0 : i32
    %c0_i32_0 = arith.constant 0 : i32
    return %arg0, %c0_i32 : i32, i32
  }
}

</mosaic_0001>

<llo_original>
// kernel: tpu_custom_call.1
$region0: #{tpu_custom_call.1}
  #allocation0 [shape = 'u32[]', space=smem, size = 0x4, offset = 0x4, fixed_abs, tag = 'smem constant byte address 0x4 - core index']
  #allocation1 [shape = 'u32[72,128]{1,0:T(1,128)}', space=vmem, size = 0x9000, scoped, tag = 'internal scratch']
  %s0 = inlined_call_operand.hbm [shape: f32[20,264], index: 0, kind: input, shape index: {}]
  %s1 = inlined_call_operand.hbm [shape: f32[20,264], index: 1, kind: input, shape index: {}]
  %s2 = inlined_call_operand.hbm [shape: f32[1,384], index: 2, kind: output, shape index: {}]
  %s3 = sld [smem:[#allocation0]]
  $region26: #{tpu_custom_call.1} parent=0
    _
  %s5 = ssub.s32 1, %s3
  %s6 = scalar_select 0, %s5, %s3
  $region1: #{tpu_custom_call.1} parent=0
    #allocation2 [shape = 'u8[36864]{0}', space=vmem, size = 0x9000, scoped, tag = 'input window, operand 0, single buffered']
    #allocation3 [shape = 's32[1]{0}', space=sflag, size = 0x4, scoped, tag = 'scoped memory for tpu_custom_call.1']
    #allocation4 [shape = 's32[1]{0}', space=sflag, size = 0x4, scoped, tag = 'scoped memory for tpu_custom_call.1']
    #allocation5 [shape = 'u8[36864]{0}', space=vmem, size = 0x9000, scoped, tag = 'input window, operand 1, single buffered']
    #allocation6 [shape = 's32[1]{0}', space=sflag, size = 0x4, scoped, tag = 'scoped memory for tpu_custom_call.1']
    #allocation7 [shape = 'u8[1536]{0}', space=vmem, size = 0x800, scoped, tag = 'output window, operand 0, single buffered']
    %7 = vsyncpa [#allocation3], 0
    %8 = vsyncpa [#allocation6], 0
    %9 = vsyncpa [#allocation4], 0
    // Predicated region
    $region2: #{tpu_custom_call.1} parent=1 // pred_check
      _
    $region3: #{tpu_custom_call.1} parent=1 // pred_check_branch
      %11 = sbr.rel (0) target = $region5
    $region4: #{tpu_custom_call.1} parent=1 // pred_region
      %13 = vsyncadd [#allocation3], 0
      %s14 = sshll.u32 %s0, 4
      %s15 = int_to_ptr.hbm [resolvable:$true] %s14
      %s16 = sshll.u32 [#allocation2], 4
      %s17 = int_to_ptr.vmem [resolvable:$true] %s16
      %22 = dma.hbm_to_vmem [thread:$0]  %s15, 1152, %s17, [#allocation3], 384, 384, 24
    $region5: #{tpu_custom_call.1} parent=1 // pred_fallthru
      _
    // Predicated region
    $region6: #{tpu_custom_call.1} parent=1 // pred_check
      _
    $region7: #{tpu_custom_call.1} parent=1 // pred_check_branch
      %24 = sbr.rel (0) target = $region9
    $region8: #{tpu_custom_call.1} parent=1 // pred_region
      %26 = vsyncadd [#allocation6], 0
      %s27 = sshll.u32 %s1, 4
      %s28 = int_to_ptr.hbm [resolvable:$true] %s27
      %s29 = sshll.u32 [#allocation5], 4
      %s30 = int_to_ptr.vmem [resolvable:$true] %s29
      %35 = dma.hbm_to_vmem [thread:$0]  %s28, 1152, %s30, [#allocation6], 384, 384, 24
    $region9: #{tpu_custom_call.1} parent=1 // pred_fallthru
      _
    // Predicated region
    $region10: #{tpu_custom_call.1} parent=1 // pred_check
      _
    $region11: #{tpu_custom_call.1} parent=1 // pred_check_branch
      %37 = sbr.rel (0) target = $region13
    $region12: #{tpu_custom_call.1} parent=1 // pred_region
      %39 = dma.done [#allocation3], 1152
    $region13: #{tpu_custom_call.1} parent=1 // pred_fallthru
      _
    // Predicated region
    $region14: #{tpu_custom_call.1} parent=1 // pred_check
      _
    $region15: #{tpu_custom_call.1} parent=1 // pred_check_branch
      %41 = sbr.rel (0) target = $region17
    $region16: #{tpu_custom_call.1} parent=1 // pred_region
      %43 = dma.done [#allocation6], 1152
    $region17: #{tpu_custom_call.1} parent=1 // pred_fallthru
      _
    %v44 = vld [vmem:[#allocation2] sm:$0xff]
    %v45 = vld [vmem:[#allocation2 + $0x8] sm:$0xff]
    %v46 = vld [vmem:[#allocation2 + $0x10] sm:$0xff]
    %v47 = vld [vmem:[#allocation2 + $0x18] sm:$0xff]
    %v48 = vld [vmem:[#allocation2 + $0x20] sm:$0xff]
    %v49 = vld [vmem:[#allocation2 + $0x28] sm:$0xff]
    %v50 = vld [vmem:[#allocation2 + $0x30] sm:$0xff]
    %v51 = vld [vmem:[#allocation2 + $0x38] sm:$0xff]
    %v52 = vld [vmem:[#allocation2 + $0x40] sm:$0xff]
    %v53 = vld [vmem:[#allocation5] sm:$0xff]
    %v54 = vld [vmem:[#allocation5 + $0x8] sm:$0xff]
    %v55 = vld [vmem:[#allocation5 + $0x10] sm:$0xff]
    %v56 = vld [vmem:[#allocation5 + $0x18] sm:$0xff]
    %v57 = vld [vmem:[#allocation5 + $0x20] sm:$0xff]
    %v58 = vld [vmem:[#allocation5 + $0x28] sm:$0xff]
    %v59 = vld [vmem:[#allocation5 + $0x30] sm:$0xff]
    %v60 = vld [vmem:[#allocation5 + $0x38] sm:$0xff]
    %v61 = vld [vmem:[#allocation5 + $0x40] sm:$0xff]
    %v62 = vand.u32 2147483647, %v44
    %v63 = vand.u32 2147483647, %v45
    %v64 = vand.u32 2147483647, %v46
    %v65 = vand.u32 2147483647, %v47
    %v66 = vand.u32 2147483647, %v48
    %v67 = vand.u32 2147483647, %v49
    %v68 = vand.u32 2147483647, %v50
    %v69 = vand.u32 2147483647, %v51
    %v70 = vand.u32 2147483647, %v52
    %vm71 = vcmp.le.f32.partialorder %v62, 3.4028235e+38
    %vm72 = vcmp.le.f32.partialorder %v63, 3.4028235e+38
    %vm73 = vcmp.le.f32.partialorder %v64, 3.4028235e+38
    %vm74 = vcmp.le.f32.partialorder %v65, 3.4028235e+38
    %vm75 = vcmp.le.f32.partialorder %v66, 3.4028235e+38
    %vm76 = vcmp.le.f32.partialorder %v67, 3.4028235e+38
    %vm77 = vcmp.le.f32.partialorder %v68, 3.4028235e+38
    %vm78 = vcmp.le.f32.partialorder %v69, 3.4028235e+38
    %vm79 = vcmp.le.f32.partialorder %v70, 3.4028235e+38
    %v80 = vsel %vm71, %v44, 0.0
    %v81 = vsel %vm72, %v45, 0.0
    %v82 = vsel %vm73, %v46, 0.0
    %v83 = vsel %vm74, %v47, 0.0
    %v84 = vsel %vm75, %v48, 0.0
    %v85 = vsel %vm76, %v49, 0.0
    %v86 = vsel %vm77, %v50, 0.0
    %v87 = vsel %vm78, %v51, 0.0
    %v88 = vsel %vm79, %v52, 0.0
    %v89 = vsub.f32 0.0, %v80
    %v90 = vsub.f32 0.0, %v81
    %v91 = vsub.f32 0.0, %v82
    %v92 = vsub.f32 0.0, %v83
    %v93 = vsub.f32 0.0, %v84
    %v94 = vsub.f32 0.0, %v85
    %v95 = vsub.f32 0.0, %v86
    %v96 = vsub.f32 0.0, %v87
    %v97 = vsub.f32 0.0, %v88
    %v98 = vmax.f32 %v89, 0.0
    %v99 = vmax.f32 %v90, 0.0
    %v100 = vmax.f32 %v91, 0.0
    %v101 = vmax.f32 %v92, 0.0
    %v102 = vmax.f32 %v93, 0.0
    %v103 = vmax.f32 %v94, 0.0
    %v104 = vmax.f32 %v95, 0.0
    %v105 = vmax.f32 %v96, 0.0
    %v106 = vmax.f32 %v97, 0.0
    %v107 = vand.u32 2147483647, %v80
    %v108 = vand.u32 2147483647, %v81
    %v109 = vand.u32 2147483647, %v82
    %v110 = vand.u32 2147483647, %v83
    %v111 = vand.u32 2147483647, %v84
    %v112 = vand.u32 2147483647, %v85
    %v113 = vand.u32 2147483647, %v86
    %v114 = vand.u32 2147483647, %v87
    %v115 = vand.u32 2147483647, %v88
    %v116 = vsub.f32 0.0, %v107
    %v117 = vsub.f32 0.0, %v108
    %v118 = vsub.f32 0.0, %v109
    %v119 = vsub.f32 0.0, %v110
    %v120 = vsub.f32 0.0, %v111
    %v121 = vsub.f32 0.0, %v112
    %v122 = vsub.f32 0.0, %v113
    %v123 = vsub.f32 0.0, %v114
    %v124 = vsub.f32 0.0, %v115
    %v125 = vmul.f32 %v116, 1.442695
    %v126 = vpow.pop %v125
    %v127 = vmul.f32 %v117, 1.442695
    %v128 = vpow.pop %v127
    %v129 = vmul.f32 %v118, 1.442695
    %v130 = vpow.pop %v129
    %v131 = vmul.f32 %v119, 1.442695
    %v132 = vpow.pop %v131
    %v133 = vmul.f32 %v120, 1.442695
    %v134 = vpow.pop %v133
    %v135 = vmul.f32 %v121, 1.442695
    %v136 = vpow.pop %v135
    %v137 = vmul.f32 %v122, 1.442695
    %v138 = vpow.pop %v137
    %v139 = vmul.f32 %v123, 1.442695
    %v140 = vpow.pop %v139
    %v141 = vmul.f32 %v124, 1.442695
    %v142 = vpow.pop %v141
    %v143 = vadd.f32 %v126, 1.0
    %v144 = vlog2.pop %v143
    %v145 = vmul.f32 %v144, 0.6931472
    %v146 = vmul.f32 -0.5, %v126
    %v147 = vadd.f32 %v146, 1.0
    %v148 = vmul.f32 %v147, %v126
    %v149 = vand.u32 2147483647, %v126
    %vm150 = vcmp.lt.f32.partialorder %v149, 0.0004427343
    %v151 = vsel %vm150, %v148, %v145
    %v152 = vadd.f32 %v128, 1.0
    %v153 = vlog2.pop %v152
    %v154 = vmul.f32 %v153, 0.6931472
    %v155 = vmul.f32 -0.5, %v128
    %v156 = vadd.f32 %v155, 1.0
    %v157 = vmul.f32 %v156, %v128
    %v158 = vand.u32 2147483647, %v128
    %vm159 = vcmp.lt.f32.partialorder %v158, 0.0004427343
    %v160 = vsel %vm159, %v157, %v154
    %v161 = vadd.f32 %v130, 1.0
    %v162 = vlog2.pop %v161
    %v163 = vmul.f32 %v162, 0.6931472
    %v164 = vmul.f32 -0.5, %v130
    %v165 = vadd.f32 %v164, 1.0
    %v166 = vmul.f32 %v165, %v130
    %v167 = vand.u32 2147483647, %v130
    %vm168 = vcmp.lt.f32.partialorder %v167, 0.0004427343
    %v169 = vsel %vm168, %v166, %v163
    %v170 = vadd.f32 %v132, 1.0
    %v171 = vlog2.pop %v170
    %v172 = vmul.f32 %v171, 0.6931472
    %v173 = vmul.f32 -0.5, %v132
    %v174 = vadd.f32 %v173, 1.0
    %v175 = vmul.f32 %v174, %v132
    %v176 = vand.u32 2147483647, %v132
    %vm177 = vcmp.lt.f32.partialorder %v176, 0.0004427343
    %v178 = vsel %vm177, %v175, %v172
    %v179 = vadd.f32 %v134, 1.0
    %v180 = vlog2.pop %v179
    %v181 = vmul.f32 %v180, 0.6931472
    %v182 = vmul.f32 -0.5, %v134
    %v183 = vadd.f32 %v182, 1.0
    %v184 = vmul.f32 %v183, %v134
    %v185 = vand.u32 2147483647, %v134
    %vm186 = vcmp.lt.f32.partialorder %v185, 0.0004427343
    %v187 = vsel %vm186, %v184, %v181
    %v188 = vadd.f32 %v136, 1.0
    %v189 = vlog2.pop %v188
    %v190 = vmul.f32 %v189, 0.6931472
    %v191 = vmul.f32 -0.5, %v136
    %v192 = vadd.f32 %v191, 1.0
    %v193 = vmul.f32 %v192, %v136
    %v194 = vand.u32 2147483647, %v136
    %vm195 = vcmp.lt.f32.partialorder %v194, 0.0004427343
    %v196 = vsel %vm195, %v193, %v190
    %v197 = vadd.f32 %v138, 1.0
    %v198 = vlog2.pop %v197
    %v199 = vmul.f32 %v198, 0.6931472
    %v200 = vmul.f32 -0.5, %v138
    %v201 = vadd.f32 %v200, 1.0
    %v202 = vmul.f32 %v201, %v138
    %v203 = vand.u32 2147483647, %v138
    %vm204 = vcmp.lt.f32.partialorder %v203, 0.0004427343
    %v205 = vsel %vm204, %v202, %v199
    %v206 = vadd.f32 %v140, 1.0
    %v207 = vlog2.pop %v206
    %v208 = vmul.f32 %v207, 0.6931472
    %v209 = vmul.f32 -0.5, %v140
    %v210 = vadd.f32 %v209, 1.0
    %v211 = vmul.f32 %v210, %v140
    %v212 = vand.u32 2147483647, %v140
    %vm213 = vcmp.lt.f32.partialorder %v212, 0.0004427343
    %v214 = vsel %vm213, %v211, %v208
    %v215 = vadd.f32 %v142, 1.0
    %v216 = vlog2.pop %v215
    %v217 = vmul.f32 %v216, 0.6931472
    %v218 = vmul.f32 -0.5, %v142
    %v219 = vadd.f32 %v218, 1.0
    %v220 = vmul.f32 %v219, %v142
    %v221 = vand.u32 2147483647, %v142
    %vm222 = vcmp.lt.f32.partialorder %v221, 0.0004427343
    %v223 = vsel %vm222, %v220, %v217
    %v224 = vadd.f32 %v98, %v151
    %v225 = vadd.f32 %v99, %v160
    %v226 = vadd.f32 %v100, %v169
    %v227 = vadd.f32 %v101, %v178
    %v228 = vadd.f32 %v102, %v187
    %v229 = vadd.f32 %v103, %v196
    %v230 = vadd.f32 %v104, %v205
    %v231 = vadd.f32 %v105, %v214
    %v232 = vadd.f32 %v106, %v223
    %v233 = vsub.f32 1.0, %v53
    %v234 = vsub.f32 1.0, %v54
    %v235 = vsub.f32 1.0, %v55
    %v236 = vsub.f32 1.0, %v56
    %v237 = vsub.f32 1.0, %v57
    %v238 = vsub.f32 1.0, %v58
    %v239 = vsub.f32 1.0, %v59
    %v240 = vsub.f32 1.0, %v60
    %v241 = vsub.f32 1.0, %v61
    %v242 = vmul.f32 %v233, %v80
    %v243 = vmul.f32 %v234, %v81
    %v244 = vmul.f32 %v235, %v82
    %v245 = vmul.f32 %v236, %v83
    %v246 = vmul.f32 %v237, %v84
    %v247 = vmul.f32 %v238, %v85
    %v248 = vmul.f32 %v239, %v86
    %v249 = vmul.f32 %v240, %v87
    %v250 = vmul.f32 %v241, %v88
    %v251 = vadd.f32 %v242, %v224
    %v252 = vadd.f32 %v243, %v225
    %v253 = vadd.f32 %v244, %v226
    %v254 = vadd.f32 %v245, %v227
    %v255 = vadd.f32 %v246, %v228
    %v256 = vadd.f32 %v247, %v229
    %v257 = vadd.f32 %v248, %v230
    %v258 = vadd.f32 %v249, %v231
    %v259 = vadd.f32 %v250, %v232
    %s260 = smul.u32 0, 24
    %v261 = vlaneseq
    %v262 = vshrl.u32 %v261, 7
    %v263 = vadd.s32 %v262, 8
    %v264 = vadd.s32 %v262, 16
    %v265 = vstv %s260
    %v266 = vadd.s32 %v265, %v262
    %v267 = vadd.s32 %v265, %v263
    %v268 = vadd.s32 %v265, %v264
    %vm269 = vcmp.lt.s32.totalorder %v266, 20
    %vm270 = vcmp.lt.s32.totalorder %v267, 20
    %vm271 = vcmp.lt.s32.totalorder %v268, 20
    %v272 = vlaneseq
    %v273 = vand.u32 %v272, 127
    %v274 = vadd.s32 %v273, 128
    %v275 = vadd.s32 %v273, 256
    %vm276 = vcmp.lt.s32.totalorder %v273, 264
    %vm277 = vcmp.lt.s32.totalorder %v274, 264
    %vm278 = vcmp.lt.s32.totalorder %v275, 264
    %vm279 = vmand %vm269, %vm276
    %vm280 = vmand %vm269, %vm277
    %vm281 = vmand %vm269, %vm278
    %vm282 = vmand %vm270, %vm276
    %vm283 = vmand %vm270, %vm277
    %vm284 = vmand %vm270, %vm278
    %vm285 = vmand %vm271, %vm276
    %vm286 = vmand %vm271, %vm277
    %vm287 = vmand %vm271, %vm278
    %v288 = vsel %vm279, %v251, 0.0
    %v289 = vsel %vm280, %v252, 0.0
    %v290 = vsel %vm281, %v253, 0.0
    %v291 = vsel %vm282, %v254, 0.0
    %v292 = vsel %vm283, %v255, 0.0
    %v293 = vsel %vm284, %v256, 0.0
    %v294 = vsel %vm285, %v257, 0.0
    %v295 = vsel %vm286, %v258, 0.0
    %v296 = vsel %vm287, %v259, 0.0
    %v297 = vadd.f32 %v288, %v291
    %v298 = vadd.f32 %v297, %v294
    %v299 = vrot.slane %v298, 4
    %v300 = vadd.f32 %v298, %v299
    %v301 = vrot.slane %v300, 2
    %v302 = vadd.f32 %v300, %v301
    %v303 = vrot.slane %v302, 1
    %v304 = vadd.f32 %v302, %v303
    %v305 = vadd.f32 %v289, %v292
    %v306 = vadd.f32 %v305, %v295
    %v307 = vrot.slane %v306, 4
    %v308 = vadd.f32 %v306, %v307
    %v309 = vrot.slane %v308, 2
    %v310 = vadd.f32 %v308, %v309
    %v311 = vrot.slane %v310, 1
    %v312 = vadd.f32 %v310, %v311
    %v313 = vadd.f32 %v290, %v293
    %v314 = vadd.f32 %v313, %v296
    %v315 = vrot.slane %v314, 4
    %v316 = vadd.f32 %v314, %v315
    %v317 = vrot.slane %v316, 2
    %v318 = vadd.f32 %v316, %v317
    %v319 = vrot.slane %v318, 1
    %v320 = vadd.f32 %v318, %v319
    %v324 = vrot.slane %v312, 7
    %v325 = vrot.slane %v320, 6
    %vm326 = vcmask 1040384
    %v327 = vsel %vm326, %v304, %v324
    %vm328 = vcmask 1041408
    %v329 = vsel %vm328, %v327, %v325
    %v331 = vlaneseq
    %vm332 = vcmp.ge.s32.totalorder %v331, 0
    %vm333 = vcmp.lt.s32.totalorder %v331, 384
    %vm334 = vmand %vm332, %vm333
    %335 = vst.msk [vmem:[#allocation7] sm:$0x7] %vm334, %v329
    // Predicated region
    $region18: #{tpu_custom_call.1} parent=1 // pred_check
      _
    $region19: #{tpu_custom_call.1} parent=1 // pred_check_branch
      %337 = sbr.rel (0) target = $region21
    $region20: #{tpu_custom_call.1} parent=1 // pred_region
      %339 = vsyncadd [#allocation4], 0
      %s341 = sshll.u32 [#allocation7], 4
      %s342 = int_to_ptr.vmem [resolvable:$true] %s341
      %s343 = sshll.u32 %s2, 4
      %s344 = int_to_ptr.hbm [resolvable:$true] %s343
      %346 = dma.vmem_to_hbm [thread:$0]  %s342, 48, %s344, [#allocation4]
    $region21: #{tpu_custom_call.1} parent=1 // pred_fallthru
      _
    // Predicated region
    $region22: #{tpu_custom_call.1} parent=1 // pred_check
      _
    $region23: #{tpu_custom_call.1} parent=1 // pred_check_branch
      %348 = sbr.rel (0) target = $region25
    $region24: #{tpu_custom_call.1} parent=1 // pred_region
      %350 = dma.done [#allocation4], 48
    $region25: #{tpu_custom_call.1} parent=1 // pred_fallthru
      _
    %351 = vsyncpa [#allocation3], 1
    %352 = vsyncpa [#allocation6], 1
    %353 = vsyncpa [#allocation4], 1

</llo_original>
